<compile_context>
chip_gen: v5e
topology: v5e:2x2
jax: 0.10.0
libtpu: 0.0.40
codegen_flags: <defaults>
</compile_context>

<pallas_src>
import functools

import jax
import jax.numpy as jnp
from jax.experimental import pallas as pl
from jax.experimental.pallas import tpu as pltpu

HIDDEN = 128


def _round_up(x, m):
    return ((x + m - 1) // m) * m


def a2c_fused_kernel(x_ref, w1_ref, b1_ref, w2_ref, b2_ref, out_ref):
    x = x_ref[...]
    # Fused first layer for both heads: [TM, D] @ [D, 256] -> [TM, 256]
    h = jnp.dot(x, w1_ref[...], preferred_element_type=jnp.float32) + b1_ref[...]
    h = jnp.maximum(h, 0.0)
    # Fused (block-diagonal) second layer: [TM, 256] @ [256, OUT_PAD] -> [TM, OUT_PAD]
    out = jnp.dot(h, w2_ref[...], preferred_element_type=jnp.float32) + b2_ref[...]
    out_ref[...] = out.astype(out_ref.dtype)


def pack_params(params, n_actions):
    """Fuse per-head weights into the kernel's packed layout."""
    out_pad = _round_up(n_actions + 1, 128)  # lane-dense output width

    # First layer: columns [0:128] = policy hidden, [128:256] = value hidden.
    w1 = jnp.concatenate([params["wp1"], params["wv1"]], axis=1)   # [D, 256]
    b1 = jnp.concatenate([params["bp1"], params["bv1"]], axis=1)   # [1, 256]

    # Second layer, block-diagonal stacked: rows [0:128] feed policy columns
    # [0:A], rows [128:256] feed the value column [A].  Remaining columns are 0.
    w2 = jnp.zeros((2 * HIDDEN, out_pad), jnp.float32)
    w2 = w2.at[:HIDDEN, :n_actions].set(params["wp2"])
    w2 = w2.at[HIDDEN:, n_actions:n_actions + 1].set(params["wv2"])
    b2 = jnp.zeros((1, out_pad), jnp.float32)
    b2 = b2.at[:, :n_actions].set(params["bp2"])
    b2 = b2.at[:, n_actions:n_actions + 1].set(params["bv2"])
    return w1, b1, w2, b2, out_pad


@functools.partial(jax.jit, static_argnames=("tm",))
def a2c_forward(x, params, *, tm=512):
    """x: [B, D] float32. params: dict of transposed weights / [1,out] biases.

    Returns (policy [B, n_actions], value [B, 1]).
    """
    B, D = x.shape
    n_actions = params["wp2"].shape[1]
    w1, b1, w2, b2, out_pad = pack_params(params, n_actions)

    # Batch tile: large rows for real rollout batches, sublane-aligned for toys.
    # (Sized well under v7x's 32 MiB scoped-VMEM default even with double
    #  buffering: 512 * max(D, out_pad) * 4B per buffer.)
    TM = min(tm, _round_up(B, 8))
    Bp = _round_up(B, TM)
    if Bp != B:
        x = jnp.pad(x, ((0, Bp - B), (0, 0)))
    grid = (Bp // TM,)

    n_w_bytes = 4 * (w1.size + b1.size + w2.size + b2.size)
    cost = pl.CostEstimate(
        flops=2 * Bp * (D * 2 * HIDDEN + 2 * HIDDEN * out_pad),
        transcendentals=0,
        bytes_accessed=4 * (Bp * D + Bp * out_pad) + n_w_bytes,
    )

    out = pl.pallas_call(
        a2c_fused_kernel,
        out_shape=jax.ShapeDtypeStruct((Bp, out_pad), jnp.float32),
        grid=grid,
        in_specs=[
            pl.BlockSpec((TM, D), lambda i: (i, 0)),          # batch-tiled x
            pl.BlockSpec(w1.shape, lambda i: (0, 0)),         # resident weights
            pl.BlockSpec(b1.shape, lambda i: (0, 0)),
            pl.BlockSpec(w2.shape, lambda i: (0, 0)),
            pl.BlockSpec(b2.shape, lambda i: (0, 0)),
        ],
        out_specs=pl.BlockSpec((TM, out_pad), lambda i: (i, 0)),
        compiler_params=pltpu.CompilerParams(
            dimension_semantics=("parallel",),                # v7x: 2 TCs split batch
        ),
        cost_estimate=cost,
    )(x, w1, b1, w2, b2)

    policy = out[:B, :n_actions]
    value = out[:B, n_actions:n_actions + 1]
    return policy, value


def init_params(key, input_shape, n_actions, hidden=HIDDEN):
    """Deterministic init, PyTorch-Linear-style uniform bounds.
    Weights stored transposed ([in, out]); biases as [1, out]."""
    ks = jax.random.split(key, 8)

    def lin(kw, kb, fan_in, fan_out):
        bound = 1.0 / jnp.sqrt(fan_in)
        w = jax.random.uniform(kw, (fan_in, fan_out), jnp.float32, -bound, bound)
        b = jax.random.uniform(kb, (1, fan_out), jnp.float32, -bound, bound)
        return w, b

    wp1, bp1 = lin(ks[0], ks[1], input_shape, hidden)
    wp2, bp2 = lin(ks[2], ks[3], hidden, n_actions)
    wv1, bv1 = lin(ks[4], ks[5], input_shape, hidden)
    wv2, bv2 = lin(ks[6], ks[7], hidden, 1)
    return dict(wp1=wp1, bp1=bp1, wp2=wp2, bp2=bp2,
                wv1=wv1, bv1=bv1, wv2=wv2, bv2=bv2)


def a2c_reference(x, p):
    hp = jnp.maximum(x @ p["wp1"] + p["bp1"], 0.0)
    policy = hp @ p["wp2"] + p["bp2"]
    hv = jnp.maximum(x @ p["wv1"] + p["bv1"], 0.0)
    value = hv @ p["wv2"] + p["bv2"]
    return policy, value


if __name__ == "__main__":
    B, D, A = 8, 32, 4  # batch, input_shape, n_actions

    key = jax.random.PRNGKey(0)
    kx, kp = jax.random.split(key)
    x = jax.random.normal(kx, (B, D), jnp.float32)
    params = init_params(kp, D, A)

    policy, value = a2c_forward(x, params)
    jax.block_until_ready((policy, value))

    ref_policy, ref_value = a2c_reference(x, params)
    assert policy.shape == (B, A) and value.shape == (B, 1)
    assert jnp.allclose(policy, ref_policy, atol=1e-5, rtol=1e-5)
    assert jnp.allclose(value, ref_value, atol=1e-5, rtol=1e-5)

    print("KERNEL_OK")
</pallas_src>

<mosaic_0001>
module attributes {stable_mosaic.version = 11 : i64} {
  func.func @a2c_fused_kernel(%arg0: i32, %arg1: memref<8x32xf32, #tpu.memory_space<vmem>>, %arg2: memref<32x256xf32, #tpu.memory_space<vmem>>, %arg3: memref<1x256xf32, #tpu.memory_space<vmem>>, %arg4: memref<256x128xf32, #tpu.memory_space<vmem>>, %arg5: memref<1x128xf32, #tpu.memory_space<vmem>>, %arg6: memref<8x128xf32, #tpu.memory_space<vmem>>) attributes {dimension_semantics = [#tpu.dimension_semantics<parallel>], iteration_bounds = array<i64: 1>, scalar_prefetch = 0 : i64, scratch_operands = 0 : i64, tpu.core_type = #tpu.core_type<tc>, window_params = [{transform_indices = @transform_0, window_bounds = array<i64: 8, 32>}, {pipeline_mode = #tpu.pipeline_mode<synchronous>, transform_indices = @transform_1, window_bounds = array<i64: 32, 256>}, {pipeline_mode = #tpu.pipeline_mode<synchronous>, transform_indices = @transform_2, window_bounds = array<i64: 1, 256>}, {pipeline_mode = #tpu.pipeline_mode<synchronous>, transform_indices = @transform_3, window_bounds = array<i64: 256, 128>}, {pipeline_mode = #tpu.pipeline_mode<synchronous>, transform_indices = @transform_4, window_bounds = array<i64: 1, 128>}, {transform_indices = @transform_5, window_bounds = array<i64: 8, 128>}]} {
    %c0 = arith.constant 0 : index
    %c0_0 = arith.constant 0 : index
    %0 = vector.load %arg1[%c0, %c0_0] : memref<8x32xf32, #tpu.memory_space<vmem>>, vector<8x32xf32>
    %c0_1 = arith.constant 0 : index
    %c0_2 = arith.constant 0 : index
    %1 = vector.load %arg2[%c0_1, %c0_2] : memref<32x256xf32, #tpu.memory_space<vmem>>, vector<32x256xf32>
    %cst = arith.constant dense<0.000000e+00> : vector<8x256xf32>
    %2 = tpu.matmul %0, %1, %cst {dimension_numbers = #tpu.dot_dimension_numbers<[1], [0], [0], [1], [0, 0, 1, 1], [], []>} : vector<8x32xf32>, vector<32x256xf32>, vector<8x256xf32> -> vector<8x256xf32>
    %c0_3 = arith.constant 0 : index
    %c0_4 = arith.constant 0 : index
    %3 = vector.load %arg3[%c0_3, %c0_4] : memref<1x256xf32, #tpu.memory_space<vmem>>, vector<1x256xf32>
    %4 = vector.broadcast %3 : vector<1x256xf32> to vector<8x256xf32>
    %5 = arith.addf %2, %4 : vector<8x256xf32>
    %cst_5 = arith.constant 0.000000e+00 : f32
    %6 = vector.broadcast %cst_5 : f32 to vector<8x256xf32>
    %7 = arith.maximumf %5, %6 : vector<8x256xf32>
    %c0_6 = arith.constant 0 : index
    %c0_7 = arith.constant 0 : index
    %8 = vector.load %arg4[%c0_6, %c0_7] : memref<256x128xf32, #tpu.memory_space<vmem>>, vector<256x128xf32>
    %cst_8 = arith.constant dense<0.000000e+00> : vector<8x128xf32>
    %9 = tpu.matmul %7, %8, %cst_8 {dimension_numbers = #tpu.dot_dimension_numbers<[1], [0], [0], [1], [0, 0, 1, 1], [], []>} : vector<8x256xf32>, vector<256x128xf32>, vector<8x128xf32> -> vector<8x128xf32>
    %c0_9 = arith.constant 0 : index
    %c0_10 = arith.constant 0 : index
    %10 = vector.load %arg5[%c0_9, %c0_10] : memref<1x128xf32, #tpu.memory_space<vmem>>, vector<1x128xf32>
    %11 = vector.broadcast %10 : vector<1x128xf32> to vector<8x128xf32>
    %12 = arith.addf %9, %11 : vector<8x128xf32>
    %c0_11 = arith.constant 0 : index
    %c0_12 = arith.constant 0 : index
    %13 = vector.load %arg6[%c0_11, %c0_12] : memref<8x128xf32, #tpu.memory_space<vmem>>, vector<8x128xf32>
    tpu.vector_store %arg6[%c0_11, %c0_12], %12 {strides = array<i32>} : memref<8x128xf32, #tpu.memory_space<vmem>>, vector<8x128xf32>,
    return
  }
  func.func @transform_0(%arg0: i32) -> (i32, i32) {
    %c0_i32 = arith.constant 0 : i32
    %c0_i32_0 = arith.constant 0 : i32
    return %arg0, %c0_i32 : i32, i32
  }
  func.func @transform_1(%arg0: i32) -> (i32, i32) {
    %c0_i32 = arith.constant 0 : i32
    %c0_i32_0 = arith.constant 0 : i32
    %c0_i32_1 = arith.constant 0 : i32
    return %c0_i32, %c0_i32_0 : i32, i32
  }
  func.func @transform_2(%arg0: i32) -> (i32, i32) {
    %c0_i32 = arith.constant 0 : i32
    %c0_i32_0 = arith.constant 0 : i32
    %c0_i32_1 = arith.constant 0 : i32
    return %c0_i32, %c0_i32_0 : i32, i32
  }
  func.func @transform_3(%arg0: i32) -> (i32, i32) {
    %c0_i32 = arith.constant 0 : i32
    %c0_i32_0 = arith.constant 0 : i32
    %c0_i32_1 = arith.constant 0 : i32
    return %c0_i32, %c0_i32_0 : i32, i32
  }
  func.func @transform_4(%arg0: i32) -> (i32, i32) {
    %c0_i32 = arith.constant 0 : i32
    %c0_i32_0 = arith.constant 0 : i32
    %c0_i32_1 = arith.constant 0 : i32
    return %c0_i32, %c0_i32_0 : i32, i32
  }
  func.func @transform_5(%arg0: i32) -> (i32, i32) {
    %c0_i32 = arith.constant 0 : i32
    %c0_i32_0 = arith.constant 0 : i32
    return %arg0, %c0_i32 : i32, i32
  }
}

</mosaic_0001>

<llo_original>
// kernel: a2c_forward.1
$region0: #{a2c_forward.1}
  #allocation0 [shape = 'u32[]', space=smem, size = 0x4, offset = 0x4, fixed_abs, tag = 'smem constant byte address 0x4 - core index']
  #allocation1 [shape = 'u32[72,128]{1,0:T(1,128)}', space=vmem, size = 0x9000, scoped, tag = 'internal scratch']
  %s0 = inlined_call_operand.vmem [shape: f32[8,32], index: 0, kind: input, shape index: {}]
  %s1 = inlined_call_operand.vmem [shape: f32[32,256], index: 1, kind: input, shape index: {}]
  %s2 = inlined_call_operand.vmem [shape: f32[1,256], index: 2, kind: input, shape index: {}]
  %s3 = inlined_call_operand.vmem [shape: f32[256,128], index: 3, kind: input, shape index: {}]
  %s4 = inlined_call_operand.vmem [shape: f32[1,128], index: 4, kind: input, shape index: {}]
  %s5 = inlined_call_operand.vmem [shape: f32[8,128], index: 5, kind: output, shape index: {}]
  %s6 = sld [smem:[#allocation0]]
  $region30: #{a2c_forward.1} parent=0
    _
  %s8 = ssub.s32 1, %s6
  %s9 = scalar_select 0, %s8, %s6
  // Predicated region
  $region2: #{a2c_forward.1} parent=0 // pred_check
    _
  $region3: #{a2c_forward.1} parent=0 // pred_check_branch
    %11 = sbr.rel (0) target = $region5
  $region4: #{a2c_forward.1} parent=0 // pred_region
    _
  $region5: #{a2c_forward.1} parent=0 // pred_fallthru
    _
  // Predicated region
  $region6: #{a2c_forward.1} parent=0 // pred_check
    _
  $region7: #{a2c_forward.1} parent=0 // pred_check_branch
    %13 = sbr.rel (0) target = $region9
  $region8: #{a2c_forward.1} parent=0 // pred_region
    _
  $region9: #{a2c_forward.1} parent=0 // pred_fallthru
    _
  // Predicated region
  $region10: #{a2c_forward.1} parent=0 // pred_check
    _
  $region11: #{a2c_forward.1} parent=0 // pred_check_branch
    %15 = sbr.rel (0) target = $region13
  $region12: #{a2c_forward.1} parent=0 // pred_region
    _
  $region13: #{a2c_forward.1} parent=0 // pred_fallthru
    _
  // Predicated region
  $region14: #{a2c_forward.1} parent=0 // pred_check
    _
  $region15: #{a2c_forward.1} parent=0 // pred_check_branch
    %17 = sbr.rel (0) target = $region17
  $region16: #{a2c_forward.1} parent=0 // pred_region
    _
  $region17: #{a2c_forward.1} parent=0 // pred_fallthru
    _
  // Predicated region
  $region18: #{a2c_forward.1} parent=0 // pred_check
    _
  $region19: #{a2c_forward.1} parent=0 // pred_check_branch
    %19 = sbr.rel (0) target = $region21
  $region20: #{a2c_forward.1} parent=0 // pred_region
    _
  $region21: #{a2c_forward.1} parent=0 // pred_fallthru
    _
  %v20 = vld [vmem:[%s0] sm:$0xff]
  %v21 = vld [vmem:[%s1] sm:$0xff]
  %v22 = vld [vmem:[%s1 + $0x8] sm:$0xff]
  %v23 = vld [vmem:[%s1 + $0x10] sm:$0xff]
  %v24 = vld [vmem:[%s1 + $0x18] sm:$0xff]
  %v25 = vld [vmem:[%s1 + $0x20] sm:$0xff]
  %v26 = vld [vmem:[%s1 + $0x28] sm:$0xff]
  %v27 = vld [vmem:[%s1 + $0x30] sm:$0xff]
  %v28 = vld [vmem:[%s1 + $0x38] sm:$0xff]
  %v29 = vld [vmem:[%s2] sm:$0x3]
  %v31 = vperm.slane %v29, 0
  %v32 = vperm.slane %v29, 1
  %vm35 = vcmask 261120
  %v37 = vsel %vm35, %v20, 0
  %39 = vmatpush.msra.mxu0 0.0
  %40 = vmatpush.msra.mxu0 0.0
  %41 = vmatpush.msra.mxu0 0.0
  %42 = vmatpush.msra.mxu0 0.0
  %43 = vmatpush.msra.mxu0 0.0
  %44 = vmatpush.msra.mxu0 0.0
  %45 = vmatpush.msra.mxu0 0.0
  %46 = vmatpush.msra.mxu0 0.0
  %47 = vmatpush.msra.mxu0 0.0
  %48 = vmatpush.msra.mxu0 0.0
  %49 = vmatpush.msra.mxu0 0.0
  %50 = vmatpush.msra.mxu0 0.0
  %51 = vmatpush.msra.mxu0 %v27
  %52 = vmatpush.msra.mxu0 %v25
  %53 = vmatpush.msra.mxu0 %v23
  %54 = vmatpush.msra.mxu0 %v21
  %55 = vmatmul.f32.gmra.mxu0 %v37
  %v56 = vpop.f32.mrf.mxu0
  %v57 = vadd.f32 %v31, %v56
  %58 = vdwg.mxu0
  %59 = vmatpush.msra.mxu0 0.0
  %60 = vmatpush.msra.mxu0 0.0
  %61 = vmatpush.msra.mxu0 0.0
  %62 = vmatpush.msra.mxu0 0.0
  %63 = vmatpush.msra.mxu0 0.0
  %64 = vmatpush.msra.mxu0 0.0
  %65 = vmatpush.msra.mxu0 0.0
  %66 = vmatpush.msra.mxu0 0.0
  %67 = vmatpush.msra.mxu0 0.0
  %68 = vmatpush.msra.mxu0 0.0
  %69 = vmatpush.msra.mxu0 0.0
  %70 = vmatpush.msra.mxu0 0.0
  %71 = vmatpush.msra.mxu0 %v28
  %72 = vmatpush.msra.mxu0 %v26
  %73 = vmatpush.msra.mxu0 %v24
  %74 = vmatpush.msra.mxu0 %v22
  %75 = vmatmul.f32.gmra.mxu0 %v37
  %v76 = vpop.f32.mrf.mxu0
  %v77 = vadd.f32 %v32, %v76
  %78 = vdwg.mxu0
  %v79 = vmax.f32 %v57, 0.0
  %v80 = vmax.f32 %v77, 0.0
  %v81 = vld [vmem:[%s3] sm:$0xff]
  %v82 = vld [vmem:[%s3 + $0x8] sm:$0xff]
  %v83 = vld [vmem:[%s3 + $0x10] sm:$0xff]
  %v84 = vld [vmem:[%s3 + $0x18] sm:$0xff]
  %v85 = vld [vmem:[%s3 + $0x20] sm:$0xff]
  %v86 = vld [vmem:[%s3 + $0x28] sm:$0xff]
  %v87 = vld [vmem:[%s3 + $0x30] sm:$0xff]
  %v88 = vld [vmem:[%s3 + $0x38] sm:$0xff]
  %v89 = vld [vmem:[%s3 + $0x40] sm:$0xff]
  %v90 = vld [vmem:[%s3 + $0x48] sm:$0xff]
  %v91 = vld [vmem:[%s3 + $0x50] sm:$0xff]
  %v92 = vld [vmem:[%s3 + $0x58] sm:$0xff]
  %v93 = vld [vmem:[%s3 + $0x60] sm:$0xff]
  %v94 = vld [vmem:[%s3 + $0x68] sm:$0xff]
  %v95 = vld [vmem:[%s3 + $0x70] sm:$0xff]
  %v96 = vld [vmem:[%s3 + $0x78] sm:$0xff]
  %v97 = vld [vmem:[%s3 + $0x80] sm:$0xff]
  %v98 = vld [vmem:[%s3 + $0x88] sm:$0xff]
  %v99 = vld [vmem:[%s3 + $0x90] sm:$0xff]
  %v100 = vld [vmem:[%s3 + $0x98] sm:$0xff]
  %v101 = vld [vmem:[%s3 + $0xa0] sm:$0xff]
  %v102 = vld [vmem:[%s3 + $0xa8] sm:$0xff]
  %v103 = vld [vmem:[%s3 + $0xb0] sm:$0xff]
  %v104 = vld [vmem:[%s3 + $0xb8] sm:$0xff]
  %v105 = vld [vmem:[%s3 + $0xc0] sm:$0xff]
  %v106 = vld [vmem:[%s3 + $0xc8] sm:$0xff]
  %v107 = vld [vmem:[%s3 + $0xd0] sm:$0xff]
  %v108 = vld [vmem:[%s3 + $0xd8] sm:$0xff]
  %v109 = vld [vmem:[%s3 + $0xe0] sm:$0xff]
  %v110 = vld [vmem:[%s3 + $0xe8] sm:$0xff]
  %v111 = vld [vmem:[%s3 + $0xf0] sm:$0xff]
  %v112 = vld [vmem:[%s3 + $0xf8] sm:$0xff]
  %v113 = vld [vmem:[%s4] sm:$0x1]
  %v115 = vperm.slane %v113, 0
  %117 = vmatpush.msra.mxu0 %v96
  %118 = vmatpush.msra.mxu0 %v95
  %119 = vmatpush.msra.mxu0 %v94
  %120 = vmatpush.msra.mxu0 %v93
  %121 = vmatpush.msra.mxu0 %v92
  %122 = vmatpush.msra.mxu0 %v91
  %123 = vmatpush.msra.mxu0 %v90
  %124 = vmatpush.msra.mxu0 %v89
  %125 = vmatpush.msra.mxu0 %v88
  %126 = vmatpush.msra.mxu0 %v87
  %127 = vmatpush.msra.mxu0 %v86
  %128 = vmatpush.msra.mxu0 %v85
  %129 = vmatpush.msra.mxu0 %v84
  %130 = vmatpush.msra.mxu0 %v83
  %131 = vmatpush.msra.mxu0 %v82
  %132 = vmatpush.msra.mxu0 %v81
  %133 = vmatmul.f32.gmra.mxu0 %v79
  %v134 = vpop.f32.mrf.mxu0
  %v135 = vadd.f32 %v115, %v134
  %136 = vdwg.mxu0
  %137 = vmatpush.msra.mxu0 %v112
  %138 = vmatpush.msra.mxu0 %v111
  %139 = vmatpush.msra.mxu0 %v110
  %140 = vmatpush.msra.mxu0 %v109
  %141 = vmatpush.msra.mxu0 %v108
  %142 = vmatpush.msra.mxu0 %v107
  %143 = vmatpush.msra.mxu0 %v106
  %144 = vmatpush.msra.mxu0 %v105
  %145 = vmatpush.msra.mxu0 %v104
  %146 = vmatpush.msra.mxu0 %v103
  %147 = vmatpush.msra.mxu0 %v102
  %148 = vmatpush.msra.mxu0 %v101
  %149 = vmatpush.msra.mxu0 %v100
  %150 = vmatpush.msra.mxu0 %v99
  %151 = vmatpush.msra.mxu0 %v98
  %152 = vmatpush.msra.mxu0 %v97
  %153 = vmatmul.f32.gmra.mxu0 %v80
  %v154 = vpop.f32.mrf.mxu0
  %v155 = vadd.f32 %v135, %v154
  %156 = vdwg.mxu0
  %157 = vst [vmem:[%s5] sm:$0xff] %v155
  // Predicated region
  $region22: #{a2c_forward.1} parent=0 // pred_check
    _
  $region23: #{a2c_forward.1} parent=0 // pred_check_branch
    %159 = sbr.rel (0) target = $region25
  $region24: #{a2c_forward.1} parent=0 // pred_region
    _
  $region25: #{a2c_forward.1} parent=0 // pred_fallthru
    _
  // Predicated region
  $region26: #{a2c_forward.1} parent=0 // pred_check
    _
  $region27: #{a2c_forward.1} parent=0 // pred_check_branch
    %161 = sbr.rel (0) target = $region29
  $region28: #{a2c_forward.1} parent=0 // pred_region
    _
  $region29: #{a2c_forward.1} parent=0 // pred_fallthru
    _

</llo_original>
